<compile_context>
chip_gen: v5e
topology: v5e:2x2
jax: 0.10.0
libtpu: 0.0.40
codegen_flags: <defaults>
</compile_context>

<pallas_src>
import jax
import jax.numpy as jnp
from jax.experimental import pallas as pl
from jax.experimental.pallas import tpu as pltpu

# Hyperparameters implied by the module (args.encode_size, args.hidden_size)
ENCODE_SIZE = 32
HIDDEN_SIZE = 32          # lin uses hidden_size * 2 = 64
ACTION_SIZE = 2
IN_DIM = ENCODE_SIZE + ACTION_SIZE
H2 = HIDDEN_SIZE * 2
OUT_DIM = 2
OUT_PAD = 128             # lane-dense padded output width
NEG_SLOPE = 0.01          # torch.nn.LeakyReLU default
MAX_TILE_B = 512          # batch tile: ~0.5 MiB of f32 activations per buffer


def _leaky_relu(x):
    return jnp.where(x > 0, x, NEG_SLOPE * x)


def critic_kernel(enc_ref, act_ref, w1e_ref, w1a_ref, b1_ref,
                  w2_ref, b2_ref, w3_ref, b3_ref, o_ref):
    # Layer 1: concat(encode, action) @ W1  ==  enc @ W1_enc + act @ W1_act
    h = (jnp.dot(enc_ref[...], w1e_ref[...], preferred_element_type=jnp.float32)
         + jnp.dot(act_ref[...], w1a_ref[...], preferred_element_type=jnp.float32)
         + b1_ref[...])
    h = _leaky_relu(h)                                                # (tb, H2)
    # Layer 2
    h = jnp.dot(h, w2_ref[...], preferred_element_type=jnp.float32) + b2_ref[...]
    h = _leaky_relu(h)                                                # (tb, H2)
    # Layer 3 (padded to 128 output lanes -> unmasked, lane-dense store)
    o = jnp.dot(h, w3_ref[...], preferred_element_type=jnp.float32) + b3_ref[...]
    o_ref[...] = o.astype(o_ref.dtype)                                # (tb, OUT_PAD)


def prepare_params(params):
    """Convert torch-layout params into the kernel layout:
    split W1 into (encode, action) parts and zero-pad W3/b3 to 128 lanes."""
    w1, b1, w2, b2, w3, b3 = params
    w1_enc = w1[:ENCODE_SIZE, :]
    w1_act = w1[ENCODE_SIZE:, :]
    w3p = jnp.zeros((H2, OUT_PAD), w3.dtype).at[:, :OUT_DIM].set(w3)
    b3p = jnp.zeros((1, OUT_PAD), b3.dtype).at[:, :OUT_DIM].set(b3)
    return (w1_enc, w1_act, b1, w2, b2, w3p, b3p)


def critic_forward(encode, action, kparams):
    """encode: (B, ENCODE_SIZE), action: (B, ACTION_SIZE) -> (B, 2)"""
    B = encode.shape[0]
    w1e, w1a, b1, w2, b2, w3p, b3p = kparams

    # Batch tile: multiple of 8 (f32 sublane), capped for VMEM / pipelining.
    tile_b = min(MAX_TILE_B, pl.cdiv(B, 8) * 8)
    grid = (pl.cdiv(B, tile_b),)

    row_map = lambda i: (i, 0)     # batch-tiled operands
    const_map = lambda i: (0, 0)   # weights: same block every step -> no re-DMA

    def wspec(shape):
        return pl.BlockSpec(shape, const_map)

    flops = 2 * B * (IN_DIM * H2 + H2 * H2 + H2 * OUT_PAD)
    weight_bytes = 4 * (ENCODE_SIZE * H2 + ACTION_SIZE * H2 + H2
                        + H2 * H2 + H2 + H2 * OUT_PAD + OUT_PAD)
    bytes_accessed = 4 * B * (ENCODE_SIZE + ACTION_SIZE + OUT_PAD) + weight_bytes

    out_padded = pl.pallas_call(
        critic_kernel,
        out_shape=jax.ShapeDtypeStruct((B, OUT_PAD), jnp.float32),
        grid=grid,
        in_specs=[
            pl.BlockSpec((tile_b, ENCODE_SIZE), row_map),
            pl.BlockSpec((tile_b, ACTION_SIZE), row_map),
            wspec((ENCODE_SIZE, H2)),
            wspec((ACTION_SIZE, H2)),
            wspec((1, H2)),
            wspec((H2, H2)),
            wspec((1, H2)),
            wspec((H2, OUT_PAD)),
            wspec((1, OUT_PAD)),
        ],
        out_specs=pl.BlockSpec((tile_b, OUT_PAD), row_map),
        compiler_params=pltpu.CompilerParams(
            dimension_semantics=("parallel",)),
        cost_estimate=pl.CostEstimate(
            flops=flops, transcendentals=0, bytes_accessed=bytes_accessed),
    )(encode, action, w1e, w1a, b1, w2, b2, w3p, b3p)

    return out_padded[:, :OUT_DIM]


def init_params(key):
    """Deterministic init matching torch.nn.Linear default
    (U[-1/sqrt(fan_in), 1/sqrt(fan_in)]).  Weights (in_features, out_features),
    biases (1, out_features)."""
    ks = jax.random.split(key, 6)

    def lin(kw, kb, fan_in, fan_out):
        bound = 1.0 / jnp.sqrt(jnp.float32(fan_in))
        w = jax.random.uniform(kw, (fan_in, fan_out), jnp.float32, -bound, bound)
        b = jax.random.uniform(kb, (1, fan_out), jnp.float32, -bound, bound)
        return w, b

    w1, b1 = lin(ks[0], ks[1], IN_DIM, H2)
    w2, b2 = lin(ks[2], ks[3], H2, H2)
    w3, b3 = lin(ks[4], ks[5], H2, OUT_DIM)
    return (w1, b1, w2, b2, w3, b3)


def critic_ref(encode, action, params):
    """Pure-JAX reference for correctness check (mirrors the PyTorch forward)."""
    w1, b1, w2, b2, w3, b3 = params
    x = jnp.concatenate([encode, action], axis=-1)
    h = jax.nn.leaky_relu(x @ w1 + b1, NEG_SLOPE)
    h = jax.nn.leaky_relu(h @ w2 + b2, NEG_SLOPE)
    return h @ w3 + b3
    # TODO(synk): delete_these(...) in the torch forward is host-side memory
    # cleanup with no kernel equivalent (intentional no-op here).


if __name__ == "__main__":
    key = jax.random.PRNGKey(0)
    k_enc, k_act, k_par, k_enc2, k_act2 = jax.random.split(key, 5)

    params = init_params(k_par)
    kparams = prepare_params(params)

    # Small primary test (B=8): single grid step.
    B = 8
    encode = jax.random.normal(k_enc, (B, ENCODE_SIZE), jnp.float32)
    action = jax.random.normal(k_act, (B, ACTION_SIZE), jnp.float32)

    out = critic_forward(encode, action, kparams)
    out = jax.block_until_ready(out)
    ref = critic_ref(encode, action, params)
    assert out.shape == (B, OUT_DIM), out.shape
    assert jnp.allclose(out, ref, atol=1e-4, rtol=1e-4), "mismatch vs JAX reference (B=8)"

    # Secondary test: multi-step grid with a partial final batch tile.
    B2 = 520
    encode2 = jax.random.normal(k_enc2, (B2, ENCODE_SIZE), jnp.float32)
    action2 = jax.random.normal(k_act2, (B2, ACTION_SIZE), jnp.float32)

    out2 = critic_forward(encode2, action2, kparams)
    out2 = jax.block_until_ready(out2)
    ref2 = critic_ref(encode2, action2, params)
    assert out2.shape == (B2, OUT_DIM), out2.shape
    assert jnp.allclose(out2, ref2, atol=1e-4, rtol=1e-4), "mismatch vs JAX reference (B=520)"

    print("KERNEL_OK")
</pallas_src>

<mosaic_0001>
module attributes {stable_mosaic.version = 11 : i64} {
  func.func @critic_kernel(%arg0: i32, %arg1: memref<8x32xf32, #tpu.memory_space<vmem>>, %arg2: memref<8x2xf32, #tpu.memory_space<vmem>>, %arg3: memref<32x64xf32, #tpu.memory_space<vmem>>, %arg4: memref<2x64xf32, #tpu.memory_space<vmem>>, %arg5: memref<1x64xf32, #tpu.memory_space<vmem>>, %arg6: memref<64x64xf32, #tpu.memory_space<vmem>>, %arg7: memref<1x64xf32, #tpu.memory_space<vmem>>, %arg8: memref<64x128xf32, #tpu.memory_space<vmem>>, %arg9: memref<1x128xf32, #tpu.memory_space<vmem>>, %arg10: memref<8x128xf32, #tpu.memory_space<vmem>>) attributes {dimension_semantics = [#tpu.dimension_semantics<parallel>], iteration_bounds = array<i64: 1>, scalar_prefetch = 0 : i64, scratch_operands = 0 : i64, tpu.core_type = #tpu.core_type<tc>, window_params = [{transform_indices = @transform_0, window_bounds = array<i64: 8, 32>}, {transform_indices = @transform_1, window_bounds = array<i64: 8, 2>}, {pipeline_mode = #tpu.pipeline_mode<synchronous>, transform_indices = @transform_2, window_bounds = array<i64: 32, 64>}, {pipeline_mode = #tpu.pipeline_mode<synchronous>, transform_indices = @transform_3, window_bounds = array<i64: 2, 64>}, {pipeline_mode = #tpu.pipeline_mode<synchronous>, transform_indices = @transform_4, window_bounds = array<i64: 1, 64>}, {pipeline_mode = #tpu.pipeline_mode<synchronous>, transform_indices = @transform_5, window_bounds = array<i64: 64, 64>}, {pipeline_mode = #tpu.pipeline_mode<synchronous>, transform_indices = @transform_6, window_bounds = array<i64: 1, 64>}, {pipeline_mode = #tpu.pipeline_mode<synchronous>, transform_indices = @transform_7, window_bounds = array<i64: 64, 128>}, {pipeline_mode = #tpu.pipeline_mode<synchronous>, transform_indices = @transform_8, window_bounds = array<i64: 1, 128>}, {transform_indices = @transform_9, window_bounds = array<i64: 8, 128>}]} {
    %c0 = arith.constant 0 : index
    %c0_0 = arith.constant 0 : index
    %0 = vector.load %arg1[%c0, %c0_0] : memref<8x32xf32, #tpu.memory_space<vmem>>, vector<8x32xf32>
    %c0_1 = arith.constant 0 : index
    %c0_2 = arith.constant 0 : index
    %1 = vector.load %arg3[%c0_1, %c0_2] : memref<32x64xf32, #tpu.memory_space<vmem>>, vector<32x64xf32>
    %cst = arith.constant dense<0.000000e+00> : vector<8x64xf32>
    %2 = tpu.matmul %0, %1, %cst {dimension_numbers = #tpu.dot_dimension_numbers<[1], [0], [0], [1], [0, 0, 1, 1], [], []>} : vector<8x32xf32>, vector<32x64xf32>, vector<8x64xf32> -> vector<8x64xf32>
    %c0_3 = arith.constant 0 : index
    %c0_4 = arith.constant 0 : index
    %3 = vector.load %arg2[%c0_3, %c0_4] : memref<8x2xf32, #tpu.memory_space<vmem>>, vector<8x2xf32>
    %c0_5 = arith.constant 0 : index
    %c0_6 = arith.constant 0 : index
    %4 = vector.load %arg4[%c0_5, %c0_6] : memref<2x64xf32, #tpu.memory_space<vmem>>, vector<2x64xf32>
    %cst_7 = arith.constant dense<0.000000e+00> : vector<8x64xf32>
    %5 = tpu.matmul %3, %4, %cst_7 {dimension_numbers = #tpu.dot_dimension_numbers<[1], [0], [0], [1], [0, 0, 1, 1], [], []>} : vector<8x2xf32>, vector<2x64xf32>, vector<8x64xf32> -> vector<8x64xf32>
    %6 = arith.addf %2, %5 : vector<8x64xf32>
    %c0_8 = arith.constant 0 : index
    %c0_9 = arith.constant 0 : index
    %7 = vector.load %arg5[%c0_8, %c0_9] : memref<1x64xf32, #tpu.memory_space<vmem>>, vector<1x64xf32>
    %8 = vector.broadcast %7 : vector<1x64xf32> to vector<8x64xf32>
    %9 = arith.addf %6, %8 : vector<8x64xf32>
    %cst_10 = arith.constant 0.000000e+00 : f32
    %10 = vector.broadcast %cst_10 : f32 to vector<8x64xf32>
    %11 = arith.cmpf ogt, %9, %10 : vector<8x64xf32>
    %cst_11 = arith.constant 0.00999999977 : f32
    %12 = vector.broadcast %cst_11 : f32 to vector<8x64xf32>
    %13 = arith.mulf %12, %9 : vector<8x64xf32>
    %14 = arith.select %11, %9, %13 : vector<8x64xi1>, vector<8x64xf32>
    %c0_12 = arith.constant 0 : index
    %c0_13 = arith.constant 0 : index
    %15 = vector.load %arg6[%c0_12, %c0_13] : memref<64x64xf32, #tpu.memory_space<vmem>>, vector<64x64xf32>
    %cst_14 = arith.constant dense<0.000000e+00> : vector<8x64xf32>
    %16 = tpu.matmul %14, %15, %cst_14 {dimension_numbers = #tpu.dot_dimension_numbers<[1], [0], [0], [1], [0, 0, 1, 1], [], []>} : vector<8x64xf32>, vector<64x64xf32>, vector<8x64xf32> -> vector<8x64xf32>
    %c0_15 = arith.constant 0 : index
    %c0_16 = arith.constant 0 : index
    %17 = vector.load %arg7[%c0_15, %c0_16] : memref<1x64xf32, #tpu.memory_space<vmem>>, vector<1x64xf32>
    %18 = vector.broadcast %17 : vector<1x64xf32> to vector<8x64xf32>
    %19 = arith.addf %16, %18 : vector<8x64xf32>
    %cst_17 = arith.constant 0.000000e+00 : f32
    %20 = vector.broadcast %cst_17 : f32 to vector<8x64xf32>
    %21 = arith.cmpf ogt, %19, %20 : vector<8x64xf32>
    %cst_18 = arith.constant 0.00999999977 : f32
    %22 = vector.broadcast %cst_18 : f32 to vector<8x64xf32>
    %23 = arith.mulf %22, %19 : vector<8x64xf32>
    %24 = arith.select %21, %19, %23 : vector<8x64xi1>, vector<8x64xf32>
    %c0_19 = arith.constant 0 : index
    %c0_20 = arith.constant 0 : index
    %25 = vector.load %arg8[%c0_19, %c0_20] : memref<64x128xf32, #tpu.memory_space<vmem>>, vector<64x128xf32>
    %cst_21 = arith.constant dense<0.000000e+00> : vector<8x128xf32>
    %26 = tpu.matmul %24, %25, %cst_21 {dimension_numbers = #tpu.dot_dimension_numbers<[1], [0], [0], [1], [0, 0, 1, 1], [], []>} : vector<8x64xf32>, vector<64x128xf32>, vector<8x128xf32> -> vector<8x128xf32>
    %c0_22 = arith.constant 0 : index
    %c0_23 = arith.constant 0 : index
    %27 = vector.load %arg9[%c0_22, %c0_23] : memref<1x128xf32, #tpu.memory_space<vmem>>, vector<1x128xf32>
    %28 = vector.broadcast %27 : vector<1x128xf32> to vector<8x128xf32>
    %29 = arith.addf %26, %28 : vector<8x128xf32>
    %c0_24 = arith.constant 0 : index
    %c0_25 = arith.constant 0 : index
    %30 = vector.load %arg10[%c0_24, %c0_25] : memref<8x128xf32, #tpu.memory_space<vmem>>, vector<8x128xf32>
    tpu.vector_store %arg10[%c0_24, %c0_25], %29 {strides = array<i32>} : memref<8x128xf32, #tpu.memory_space<vmem>>, vector<8x128xf32>,
    return
  }
  func.func @transform_0(%arg0: i32) -> (i32, i32) {
    %c0_i32 = arith.constant 0 : i32
    %c0_i32_0 = arith.constant 0 : i32
    return %arg0, %c0_i32 : i32, i32
  }
  func.func @transform_1(%arg0: i32) -> (i32, i32) {
    %c0_i32 = arith.constant 0 : i32
    %c0_i32_0 = arith.constant 0 : i32
    return %arg0, %c0_i32 : i32, i32
  }
  func.func @transform_2(%arg0: i32) -> (i32, i32) {
    %c0_i32 = arith.constant 0 : i32
    %c0_i32_0 = arith.constant 0 : i32
    %c0_i32_1 = arith.constant 0 : i32
    return %c0_i32, %c0_i32_0 : i32, i32
  }
  func.func @transform_3(%arg0: i32) -> (i32, i32) {
    %c0_i32 = arith.constant 0 : i32
    %c0_i32_0 = arith.constant 0 : i32
    %c0_i32_1 = arith.constant 0 : i32
    return %c0_i32, %c0_i32_0 : i32, i32
  }
  func.func @transform_4(%arg0: i32) -> (i32, i32) {
    %c0_i32 = arith.constant 0 : i32
    %c0_i32_0 = arith.constant 0 : i32
    %c0_i32_1 = arith.constant 0 : i32
    return %c0_i32, %c0_i32_0 : i32, i32
  }
  func.func @transform_5(%arg0: i32) -> (i32, i32) {
    %c0_i32 = arith.constant 0 : i32
    %c0_i32_0 = arith.constant 0 : i32
    %c0_i32_1 = arith.constant 0 : i32
    return %c0_i32, %c0_i32_0 : i32, i32
  }
  func.func @transform_6(%arg0: i32) -> (i32, i32) {
    %c0_i32 = arith.constant 0 : i32
    %c0_i32_0 = arith.constant 0 : i32
    %c0_i32_1 = arith.constant 0 : i32
    return %c0_i32, %c0_i32_0 : i32, i32
  }
  func.func @transform_7(%arg0: i32) -> (i32, i32) {
    %c0_i32 = arith.constant 0 : i32
    %c0_i32_0 = arith.constant 0 : i32
    %c0_i32_1 = arith.constant 0 : i32
    return %c0_i32, %c0_i32_0 : i32, i32
  }
  func.func @transform_8(%arg0: i32) -> (i32, i32) {
    %c0_i32 = arith.constant 0 : i32
    %c0_i32_0 = arith.constant 0 : i32
    %c0_i32_1 = arith.constant 0 : i32
    return %c0_i32, %c0_i32_0 : i32, i32
  }
  func.func @transform_9(%arg0: i32) -> (i32, i32) {
    %c0_i32 = arith.constant 0 : i32
    %c0_i32_0 = arith.constant 0 : i32
    return %arg0, %c0_i32 : i32, i32
  }
}

</mosaic_0001>

<llo_original>
// kernel: tpu_custom_call.1
$region0: #{tpu_custom_call.1}
  #allocation0 [shape = 'u32[]', space=smem, size = 0x4, offset = 0x4, fixed_abs, tag = 'smem constant byte address 0x4 - core index']
  #allocation1 [shape = 'u32[72,128]{1,0:T(1,128)}', space=vmem, size = 0x9000, scoped, tag = 'internal scratch']
  %s0 = inlined_call_operand.vmem [shape: f32[8,32], index: 0, kind: input, shape index: {}]
  %s1 = inlined_call_operand.vmem [shape: f32[8,2], index: 1, kind: input, shape index: {}]
  %s2 = inlined_call_operand.hbm [shape: f32[32,64], index: 2, kind: input, shape index: {}]
  %s3 = inlined_call_operand.vmem [shape: f32[2,64], index: 3, kind: input, shape index: {}]
  %s4 = inlined_call_operand.vmem [shape: f32[1,64], index: 4, kind: input, shape index: {}]
  %s5 = inlined_call_operand.hbm [shape: f32[64,64], index: 5, kind: input, shape index: {}]
  %s6 = inlined_call_operand.vmem [shape: f32[1,64], index: 6, kind: input, shape index: {}]
  %s7 = inlined_call_operand.hbm [shape: f32[64,128], index: 7, kind: input, shape index: {}]
  %s8 = inlined_call_operand.vmem [shape: f32[1,128], index: 8, kind: input, shape index: {}]
  %s9 = inlined_call_operand.hbm [shape: f32[8,128], index: 9, kind: output, shape index: {}]
  %s10 = sld [smem:[#allocation0]]
  $region58: #{tpu_custom_call.1} parent=0
    _
  %s12 = ssub.s32 1, %s10
  %s13 = scalar_select 0, %s12, %s10
  $region1: #{tpu_custom_call.1} parent=0
    #allocation2 [shape = 'u8[16384]{0}', space=vmem, size = 0x4000, scoped, tag = 'input window, operand 2, single buffered']
    #allocation3 [shape = 's32[1]{0}', space=sflag, size = 0x4, scoped, tag = 'scoped memory for tpu_custom_call.1']
    #allocation4 [shape = 's32[1]{0}', space=sflag, size = 0x4, scoped, tag = 'scoped memory for tpu_custom_call.1']
    #allocation5 [shape = 'u8[32768]{0}', space=vmem, size = 0x8000, scoped, tag = 'input window, operand 5, single buffered']
    #allocation6 [shape = 's32[1]{0}', space=sflag, size = 0x4, scoped, tag = 'scoped memory for tpu_custom_call.1']
    #allocation7 [shape = 'u8[32768]{0}', space=vmem, size = 0x8000, scoped, tag = 'input window, operand 7, single buffered']
    #allocation8 [shape = 'u8[4096]{0}', space=vmem, size = 0x1000, scoped, tag = 'output window, operand 0, single buffered']
    %14 = vsyncpa [#allocation3], 0
    %15 = vsyncpa [#allocation6], 0
    %16 = vsyncpa [#allocation4], 0
    // Predicated region
    $region2: #{tpu_custom_call.1} parent=1 // pred_check
      _
    $region3: #{tpu_custom_call.1} parent=1 // pred_check_branch
      %18 = sbr.rel (0) target = $region5
    $region4: #{tpu_custom_call.1} parent=1 // pred_region
      _
    $region5: #{tpu_custom_call.1} parent=1 // pred_fallthru
      _
    // Predicated region
    $region6: #{tpu_custom_call.1} parent=1 // pred_check
      _
    $region7: #{tpu_custom_call.1} parent=1 // pred_check_branch
      %20 = sbr.rel (0) target = $region9
    $region8: #{tpu_custom_call.1} parent=1 // pred_region
      _
    $region9: #{tpu_custom_call.1} parent=1 // pred_fallthru
      _
    // Predicated region
    $region10: #{tpu_custom_call.1} parent=1 // pred_check
      _
    $region11: #{tpu_custom_call.1} parent=1 // pred_check_branch
      %22 = sbr.rel (0) target = $region13
    $region12: #{tpu_custom_call.1} parent=1 // pred_region
      %24 = vsyncadd [#allocation3], 0
      %s25 = sshll.u32 %s2, 4
      %s26 = int_to_ptr.hbm [resolvable:$true] %s25
      %s27 = sshll.u32 [#allocation2], 4
      %s28 = int_to_ptr.vmem [resolvable:$true] %s27
      %33 = dma.hbm_to_vmem [thread:$0]  %s26, 512, %s28, [#allocation3], 128, 128, 8
    $region13: #{tpu_custom_call.1} parent=1 // pred_fallthru
      _
    // Predicated region
    $region14: #{tpu_custom_call.1} parent=1 // pred_check
      _
    $region15: #{tpu_custom_call.1} parent=1 // pred_check_branch
      %35 = sbr.rel (0) target = $region17
    $region16: #{tpu_custom_call.1} parent=1 // pred_region
      _
    $region17: #{tpu_custom_call.1} parent=1 // pred_fallthru
      _
    // Predicated region
    $region18: #{tpu_custom_call.1} parent=1 // pred_check
      _
    $region19: #{tpu_custom_call.1} parent=1 // pred_check_branch
      %37 = sbr.rel (0) target = $region21
    $region20: #{tpu_custom_call.1} parent=1 // pred_region
      _
    $region21: #{tpu_custom_call.1} parent=1 // pred_fallthru
      _
    // Predicated region
    $region22: #{tpu_custom_call.1} parent=1 // pred_check
      _
    $region23: #{tpu_custom_call.1} parent=1 // pred_check_branch
      %39 = sbr.rel (0) target = $region25
    $region24: #{tpu_custom_call.1} parent=1 // pred_region
      %41 = vsyncadd [#allocation6], 0
      %s42 = sshll.u32 %s5, 4
      %s43 = int_to_ptr.hbm [resolvable:$true] %s42
      %s44 = sshll.u32 [#allocation5], 4
      %s45 = int_to_ptr.vmem [resolvable:$true] %s44
      %50 = dma.hbm_to_vmem [thread:$0]  %s43, 1024, %s45, [#allocation6], 128, 128, 8
    $region25: #{tpu_custom_call.1} parent=1 // pred_fallthru
      _
    // Predicated region
    $region26: #{tpu_custom_call.1} parent=1 // pred_check
      _
    $region27: #{tpu_custom_call.1} parent=1 // pred_check_branch
      %52 = sbr.rel (0) target = $region29
    $region28: #{tpu_custom_call.1} parent=1 // pred_region
      _
    $region29: #{tpu_custom_call.1} parent=1 // pred_fallthru
      _
    // Predicated region
    $region30: #{tpu_custom_call.1} parent=1 // pred_check
      _
    $region31: #{tpu_custom_call.1} parent=1 // pred_check_branch
      %54 = sbr.rel (0) target = $region33
    $region32: #{tpu_custom_call.1} parent=1 // pred_region
      %56 = vsyncadd [#allocation6], 0
      %s57 = sshll.u32 %s7, 4
      %s58 = int_to_ptr.hbm [resolvable:$true] %s57
      %s59 = sshll.u32 [#allocation7], 4
      %s60 = int_to_ptr.vmem [resolvable:$true] %s59
      %65 = dma.hbm_to_vmem [thread:$0]  %s58, 1024, %s60, [#allocation6], 128, 128, 8
    $region33: #{tpu_custom_call.1} parent=1 // pred_fallthru
      _
    // Predicated region
    $region34: #{tpu_custom_call.1} parent=1 // pred_check
      _
    $region35: #{tpu_custom_call.1} parent=1 // pred_check_branch
      %67 = sbr.rel (0) target = $region37
    $region36: #{tpu_custom_call.1} parent=1 // pred_region
      _
    $region37: #{tpu_custom_call.1} parent=1 // pred_fallthru
      _
    // Predicated region
    $region38: #{tpu_custom_call.1} parent=1 // pred_check
      _
    $region39: #{tpu_custom_call.1} parent=1 // pred_check_branch
      %69 = sbr.rel (0) target = $region41
    $region40: #{tpu_custom_call.1} parent=1 // pred_region
      %71 = dma.done [#allocation3], 512
    $region41: #{tpu_custom_call.1} parent=1 // pred_fallthru
      _
    // Predicated region
    $region42: #{tpu_custom_call.1} parent=1 // pred_check
      _
    $region43: #{tpu_custom_call.1} parent=1 // pred_check_branch
      %73 = sbr.rel (0) target = $region45
    $region44: #{tpu_custom_call.1} parent=1 // pred_region
      %75 = dma.done [#allocation6], 1024
    $region45: #{tpu_custom_call.1} parent=1 // pred_fallthru
      _
    // Predicated region
    $region46: #{tpu_custom_call.1} parent=1 // pred_check
      _
    $region47: #{tpu_custom_call.1} parent=1 // pred_check_branch
      %77 = sbr.rel (0) target = $region49
    $region48: #{tpu_custom_call.1} parent=1 // pred_region
      %79 = dma.done [#allocation6], 1024
    $region49: #{tpu_custom_call.1} parent=1 // pred_fallthru
      _
    %v80 = vld [vmem:[%s0] sm:$0xff]
    %v81 = vld [vmem:[#allocation2] sm:$0xff]
    %v82 = vld [vmem:[#allocation2 + $0x8] sm:$0xff]
    %v83 = vld [vmem:[#allocation2 + $0x10] sm:$0xff]
    %v84 = vld [vmem:[#allocation2 + $0x18] sm:$0xff]
    %v85 = vld [vmem:[%s1] sm:$0xff]
    %v86 = vld [vmem:[%s3] sm:$0x3]
    %vm87 = vcmask 15360
    %v89 = vsel %vm87, %v85, 0
    %vm91 = vcmask 1041408
    %v93 = vsel %vm91, %v86, 0
    %95 = vmatpush.msra.mxu0 0.0
    %96 = vmatpush.msra.mxu0 0.0
    %97 = vmatpush.msra.mxu0 0.0
    %98 = vmatpush.msra.mxu0 0.0
    %99 = vmatpush.msra.mxu0 0.0
    %100 = vmatpush.msra.mxu0 0.0
    %101 = vmatpush.msra.mxu0 0.0
    %102 = vmatpush.msra.mxu0 0.0
    %103 = vmatpush.msra.mxu0 0.0
    %104 = vmatpush.msra.mxu0 0.0
    %105 = vmatpush.msra.mxu0 0.0
    %106 = vmatpush.msra.mxu0 0.0
    %107 = vmatpush.msra.mxu0 0.0
    %108 = vmatpush.msra.mxu0 0.0
    %109 = vmatpush.msra.mxu0 0.0
    %110 = vmatpush.msra.mxu0 %v93
    %111 = vmatmul.f32.gmra.mxu0 %v89
    %v112 = vpop.f32.mrf.mxu0
    %v113 = vadd.f32 0.0, %v112
    %114 = vdwg.mxu0
    %vm115 = vcmask 261120
    %v117 = vsel %vm115, %v80, 0
    %119 = vmatpush.msra.mxu0 0.0
    %120 = vmatpush.msra.mxu0 0.0
    %121 = vmatpush.msra.mxu0 0.0
    %122 = vmatpush.msra.mxu0 0.0
    %123 = vmatpush.msra.mxu0 0.0
    %124 = vmatpush.msra.mxu0 0.0
    %125 = vmatpush.msra.mxu0 0.0
    %126 = vmatpush.msra.mxu0 0.0
    %127 = vmatpush.msra.mxu0 0.0
    %128 = vmatpush.msra.mxu0 0.0
    %129 = vmatpush.msra.mxu0 0.0
    %130 = vmatpush.msra.mxu0 0.0
    %131 = vmatpush.msra.mxu0 %v84
    %132 = vmatpush.msra.mxu0 %v83
    %133 = vmatpush.msra.mxu0 %v82
    %134 = vmatpush.msra.mxu0 %v81
    %135 = vmatmul.f32.gmra.mxu0 %v117
    %v136 = vpop.f32.mrf.mxu0
    %v137 = vadd.f32 %v113, %v136
    %138 = vdwg.mxu0
    %v139 = vld [vmem:[%s4] sm:$0x1]
    %v141 = vperm.slane %v139, 0
    %v143 = vadd.f32 %v137, %v141
    %vm144 = vcmp.gt.f32.partialorder %v143, 0.0
    %v145 = vmul.f32 %v143, 0.01
    %v146 = vsel %vm144, %v143, %v145
    %v147 = vld [vmem:[#allocation5] sm:$0xff]
    %v148 = vld [vmem:[#allocation5 + $0x8] sm:$0xff]
    %v149 = vld [vmem:[#allocation5 + $0x10] sm:$0xff]
    %v150 = vld [vmem:[#allocation5 + $0x18] sm:$0xff]
    %v151 = vld [vmem:[#allocation5 + $0x20] sm:$0xff]
    %v152 = vld [vmem:[#allocation5 + $0x28] sm:$0xff]
    %v153 = vld [vmem:[#allocation5 + $0x30] sm:$0xff]
    %v154 = vld [vmem:[#allocation5 + $0x38] sm:$0xff]
    %v155 = vld [vmem:[%s6] sm:$0x1]
    %v157 = vperm.slane %v155, 0
    %vm159 = vcmask 523264
    %v161 = vsel %vm159, %v146, 0
    %163 = vmatpush.msra.mxu0 0.0
    %164 = vmatpush.msra.mxu0 0.0
    %165 = vmatpush.msra.mxu0 0.0
    %166 = vmatpush.msra.mxu0 0.0
    %167 = vmatpush.msra.mxu0 0.0
    %168 = vmatpush.msra.mxu0 0.0
    %169 = vmatpush.msra.mxu0 0.0
    %170 = vmatpush.msra.mxu0 0.0
    %171 = vmatpush.msra.mxu0 %v154
    %172 = vmatpush.msra.mxu0 %v153
    %173 = vmatpush.msra.mxu0 %v152
    %174 = vmatpush.msra.mxu0 %v151
    %175 = vmatpush.msra.mxu0 %v150
    %176 = vmatpush.msra.mxu0 %v149
    %177 = vmatpush.msra.mxu0 %v148
    %178 = vmatpush.msra.mxu0 %v147
    %179 = vmatmul.f32.gmra.mxu0 %v161
    %v180 = vpop.f32.mrf.mxu0
    %v181 = vadd.f32 %v157, %v180
    %182 = vdwg.mxu0
    %vm183 = vcmp.gt.f32.partialorder %v181, 0.0
    %v184 = vmul.f32 %v181, 0.01
    %v185 = vsel %vm183, %v181, %v184
    %v186 = vld [vmem:[#allocation7] sm:$0xff]
    %v187 = vld [vmem:[#allocation7 + $0x8] sm:$0xff]
    %v188 = vld [vmem:[#allocation7 + $0x10] sm:$0xff]
    %v189 = vld [vmem:[#allocation7 + $0x18] sm:$0xff]
    %v190 = vld [vmem:[#allocation7 + $0x20] sm:$0xff]
    %v191 = vld [vmem:[#allocation7 + $0x28] sm:$0xff]
    %v192 = vld [vmem:[#allocation7 + $0x30] sm:$0xff]
    %v193 = vld [vmem:[#allocation7 + $0x38] sm:$0xff]
    %v194 = vld [vmem:[%s8] sm:$0x1]
    %v196 = vperm.slane %v194, 0
    %v199 = vsel %vm159, %v185, 0
    %201 = vmatpush.msra.mxu0 0.0
    %202 = vmatpush.msra.mxu0 0.0
    %203 = vmatpush.msra.mxu0 0.0
    %204 = vmatpush.msra.mxu0 0.0
    %205 = vmatpush.msra.mxu0 0.0
    %206 = vmatpush.msra.mxu0 0.0
    %207 = vmatpush.msra.mxu0 0.0
    %208 = vmatpush.msra.mxu0 0.0
    %209 = vmatpush.msra.mxu0 %v193
    %210 = vmatpush.msra.mxu0 %v192
    %211 = vmatpush.msra.mxu0 %v191
    %212 = vmatpush.msra.mxu0 %v190
    %213 = vmatpush.msra.mxu0 %v189
    %214 = vmatpush.msra.mxu0 %v188
    %215 = vmatpush.msra.mxu0 %v187
    %216 = vmatpush.msra.mxu0 %v186
    %217 = vmatmul.f32.gmra.mxu0 %v199
    %v218 = vpop.f32.mrf.mxu0
    %v219 = vadd.f32 %v196, %v218
    %220 = vdwg.mxu0
    %221 = vst [vmem:[#allocation8] sm:$0xff] %v219
    // Predicated region
    $region50: #{tpu_custom_call.1} parent=1 // pred_check
      _
    $region51: #{tpu_custom_call.1} parent=1 // pred_check_branch
      %223 = sbr.rel (0) target = $region53
    $region52: #{tpu_custom_call.1} parent=1 // pred_region
      %225 = vsyncadd [#allocation4], 0
      %s227 = sshll.u32 [#allocation8], 4
      %s228 = int_to_ptr.vmem [resolvable:$true] %s227
      %s229 = sshll.u32 %s9, 4
      %s230 = int_to_ptr.hbm [resolvable:$true] %s229
      %232 = dma.vmem_to_hbm [thread:$0]  %s228, 128, %s230, [#allocation4]
    $region53: #{tpu_custom_call.1} parent=1 // pred_fallthru
      _
    // Predicated region
    $region54: #{tpu_custom_call.1} parent=1 // pred_check
      _
    $region55: #{tpu_custom_call.1} parent=1 // pred_check_branch
      %234 = sbr.rel (0) target = $region57
    $region56: #{tpu_custom_call.1} parent=1 // pred_region
      %236 = dma.done [#allocation4], 128
    $region57: #{tpu_custom_call.1} parent=1 // pred_fallthru
      _
    %237 = vsyncpa [#allocation3], 1
    %238 = vsyncpa [#allocation6], 1
    %239 = vsyncpa [#allocation4], 1

</llo_original>
